<compile_context>
chip_gen: v5e
topology: v5e:2x2
jax: 0.10.0
libtpu: 0.0.40
codegen_flags: <defaults>
</compile_context>

<pallas_src>
import jax
import jax.numpy as jnp
from jax.experimental import pallas as pl
from jax.experimental.pallas import tpu as pltpu


_TB_MAX = 1024   # max batch rows per grid tile (h tile is (TB,128) f32 ~ 512 KiB at 1024)


def _cdiv(a, b):
    return -(-a // b)


# ---------------------------------------------------------------------------
# Kernels
# ---------------------------------------------------------------------------
# Packed parameter layout (single (8,128) f32 VMEM operand shared by both kernels):
#   rows 0..3 : w1            (in, out) = (4, 128)
#   row  4    : b1            (128,)
#   row  5    : wd = w2[:,0] - w2[:,1]
#   row  6    : [bd, 0, ..., 0]   with bd = b2[0] - b2[1]   (enters the lane-sum once)
#   row  7    : zeros (tile padding)

def _single_state_kernel(x_ref, wb_ref, o_ref):
    """Single CartPole state.  No MXU: 4 scalar*(1,128) VPU FMAs + one lane reduction + EUP exp.

    x_ref : SMEM (4,)     observation scalars
    wb_ref: VMEM (8,128)  packed parameters (see layout above)
    o_ref : VMEM (1,2)    softmax probabilities
    """
    h = (x_ref[0] * wb_ref[0:1, :]
         + x_ref[1] * wb_ref[1:2, :]
         + x_ref[2] * wb_ref[2:3, :]
         + x_ref[3] * wb_ref[3:4, :]
         + wb_ref[4:5, :])
    h = jnp.maximum(h, 0.0)                                          # (1, 128)

    # Logit difference only: d = l0 - l1 = h.wd + bd  (bd sits in lane 0 of row 6).
    d = jnp.sum(h * wb_ref[5:6, :] + wb_ref[6:7, :], axis=1, keepdims=True)  # (1, 1)

    # softmax([l0, l1]) == [sigmoid(d), 1 - sigmoid(d)]  (exact identity, sums to 1).
    p0 = 1.0 / (1.0 + jnp.exp(-d))                                   # (1, 1)
    col = jax.lax.broadcasted_iota(jnp.int32, o_ref.shape, 1)        # (1, 2)
    o_ref[...] = jnp.where(col == 0, p0, 1.0 - p0)


def _batched_kernel(x_ref, wb_ref, o_ref):
    """One batch-major tile: (TB,4) states -> (TB,2) softmax probs.  Exact f32 VPU math.

    x_ref : VMEM (TB, 4)   state tile (batch-major; no host-side transpose)
    wb_ref: VMEM (8, 128)  packed parameters (resident across the grid; constant index map)
    o_ref : VMEM (TB, 2)   per-state softmax probabilities
    """
    x = x_ref[...]                                                   # (TB, 4)
    # lin1 + ReLU as 4 broadcast FMAs (K=4 is too small to be worth MXU fill/drain here).
    h = (x[:, 0:1] * wb_ref[0:1, :]
         + x[:, 1:2] * wb_ref[1:2, :]
         + x[:, 2:3] * wb_ref[2:3, :]
         + x[:, 3:4] * wb_ref[3:4, :]
         + wb_ref[4:5, :])                                           # (TB, 128)
    h = jnp.maximum(h, 0.0)

    # lin2 collapsed to the column-difference matvec (+ bd once per row via lane 0 of row 6).
    d = jnp.sum(h * wb_ref[5:6, :] + wb_ref[6:7, :], axis=1, keepdims=True)  # (TB, 1)

    p0 = 1.0 / (1.0 + jnp.exp(-d))                                   # (TB, 1)
    col = jax.lax.broadcasted_iota(jnp.int32, o_ref.shape, 1)        # (TB, 2)
    o_ref[...] = jnp.where(col == 0, p0, 1.0 - p0)


# ---------------------------------------------------------------------------
# Wrappers
# ---------------------------------------------------------------------------
def prepare_params(w1, b1, w2, b2):
    """Pack parameters ONCE into a single (8,128) f32 operand; keep it resident across steps.

    w1: (4,128), b1: (128,), w2: (128,2), b2: (2,)   (weights stored as (in, out)).
    """
    w1 = jnp.asarray(w1, jnp.float32)
    b1 = jnp.asarray(b1, jnp.float32)
    w2 = jnp.asarray(w2, jnp.float32)
    b2 = jnp.asarray(b2, jnp.float32)
    wd = (w2[:, 0] - w2[:, 1]).reshape(1, 128)
    bd_row = jnp.zeros((1, 128), jnp.float32).at[0, 0].set(b2[0] - b2[1])
    wb = jnp.concatenate(
        [w1, b1.reshape(1, 128), wd, bd_row, jnp.zeros((1, 128), jnp.float32)], axis=0)
    return {"wb": wb}                                                # (8, 128)


@jax.jit
def reinforce_net_forward(x, params):
    """Exactly the PyTorch module's forward: x (4,) float32 -> softmax probs (2,).

    NOTE: at B=1 the pallas_call dispatch + 2 tiny DMAs are the fixed cost floor; prefer
    reinforce_net_forward_batched for vectorized envs.
    """
    out = pl.pallas_call(
        _single_state_kernel,
        out_shape=jax.ShapeDtypeStruct((1, 2), jnp.float32),
        in_specs=[
            pl.BlockSpec(memory_space=pltpu.MemorySpace.SMEM),   # x  (4,)
            pl.BlockSpec(memory_space=pltpu.MemorySpace.VMEM),   # wb (8, 128)
        ],
        out_specs=pl.BlockSpec(memory_space=pltpu.MemorySpace.VMEM),
    )(x, params["wb"])
    return out.reshape(2)


def _batch_tiling(B):
    """Pick (tile_rows, num_tiles, padded_B).

    Big tiles amortize the ~0.35us/step grid overhead; keep >= 2 tiles when B >= 16 so
    dimension_semantics=("parallel",) actually spans both TensorCores on v7x.
    """
    if B < 16:
        return B, 1, B                       # single full-array block (no 8-row constraint)
    n = max(2, _cdiv(B, _TB_MAX))
    tb = _cdiv(_cdiv(B, n), 8) * 8           # sublane-aligned tile rows
    n = _cdiv(B, tb)
    return tb, n, n * tb


@jax.jit
def reinforce_net_forward_batched(x_batch, params):
    """Vectorized-env path: x (B,4) float32 -> per-state softmax probs (B,2).  Any B >= 1."""
    B = x_batch.shape[0]
    tb, n, Bp = _batch_tiling(B)
    x_in = x_batch if Bp == B else jnp.pad(x_batch, ((0, Bp - B), (0, 0)))

    out = pl.pallas_call(
        _batched_kernel,
        out_shape=jax.ShapeDtypeStruct((Bp, 2), jnp.float32),
        grid=(n,),
        in_specs=[
            pl.BlockSpec((tb, 4), lambda i: (i, 0)),      # state tile (batch-major)
            pl.BlockSpec((8, 128), lambda i: (0, 0)),     # packed params (resident)
        ],
        out_specs=pl.BlockSpec((tb, 2), lambda i: (i, 0)),
        compiler_params=pltpu.CompilerParams(
            # Batch tiles are independent -> on v7x the two TensorCores split the grid.
            dimension_semantics=("parallel",),
        ),
    )(x_in, params["wb"])
    return out if Bp == B else out[:B]


# ---------------------------------------------------------------------------
# Init & reference
# ---------------------------------------------------------------------------
def init_params(key):
    """PyTorch nn.Linear-style init U(-1/sqrt(fan_in), 1/sqrt(fan_in)); weights as (in, out)."""
    k1, k2, k3, k4 = jax.random.split(key, 4)
    bound1 = 1.0 / jnp.sqrt(4.0)
    bound2 = 1.0 / jnp.sqrt(128.0)
    w1 = jax.random.uniform(k1, (4, 128), jnp.float32, -bound1, bound1)
    b1 = jax.random.uniform(k2, (128,), jnp.float32, -bound1, bound1)
    w2 = jax.random.uniform(k3, (128, 2), jnp.float32, -bound2, bound2)
    b2 = jax.random.uniform(k4, (2,), jnp.float32, -bound2, bound2)
    return w1, b1, w2, b2


def reference_forward(x, w1, b1, w2, b2):
    """Plain-JAX exact-f32 reference: relu(x @ w1 + b1) -> softmax(h @ w2 + b2)."""
    hi = jax.lax.Precision.HIGHEST
    h = jnp.maximum(jnp.dot(x, w1, precision=hi) + b1, 0.0)
    logits = jnp.dot(h, w2, precision=hi) + b2
    return jax.nn.softmax(logits, axis=-1)


if __name__ == "__main__":
    key = jax.random.PRNGKey(0)
    k_x, k_p, k_b, k_r = jax.random.split(key, 4)

    w1, b1, w2, b2 = init_params(k_p)
    params = prepare_params(w1, b1, w2, b2)

    # --- single-state path: exactly the PyTorch module's forward ((4,) -> (2,)) ---
    x1 = jax.random.normal(k_x, (4,), jnp.float32)
    p1 = jax.block_until_ready(reinforce_net_forward(x1, params))
    ref1 = reference_forward(x1, w1, b1, w2, b2)
    assert p1.shape == (2,)
    assert jnp.allclose(p1, ref1, atol=1e-5, rtol=1e-5)
    assert jnp.allclose(jnp.sum(p1), 1.0, atol=1e-6)

    # --- batched path: vectorized-env batch ((B,4) -> (B,2)), B divides tiling exactly ---
    B = 256                                     # -> 2 parallel tiles of 128 rows, no padding
    xb = jax.random.normal(k_b, (B, 4), jnp.float32)
    pb = jax.block_until_ready(reinforce_net_forward_batched(xb, params))
    refb = reference_forward(xb, w1, b1, w2, b2)
    assert pb.shape == (B, 2)
    assert jnp.allclose(pb, refb, atol=1e-5, rtol=1e-5)   # exact-f32 kernel -> tight parity
    assert jnp.allclose(jnp.sum(pb, axis=-1), jnp.ones((B,)), atol=1e-6)

    # --- batched path with a ragged batch size (exercises the pad-and-slice path) ---
    Br = 100                                    # -> 2 tiles of 56 rows, padded to 112
    xr = jax.random.normal(k_r, (Br, 4), jnp.float32)
    pr = jax.block_until_ready(reinforce_net_forward_batched(xr, params))
    refr = reference_forward(xr, w1, b1, w2, b2)
    assert pr.shape == (Br, 2)
    assert jnp.allclose(pr, refr, atol=1e-5, rtol=1e-5)
    assert jnp.allclose(jnp.sum(pr, axis=-1), jnp.ones((Br,)), atol=1e-6)

    print("KERNEL_OK")
</pallas_src>

<mosaic_0001>
module attributes {stable_mosaic.version = 11 : i64} {
  func.func @_single_state_kernel(%arg0: memref<4xf32, #tpu.memory_space<smem>>, %arg1: memref<8x128xf32, #tpu.memory_space<vmem>>, %arg2: memref<1x2xf32, #tpu.memory_space<vmem>>) attributes {dimension_semantics = [], scalar_prefetch = 0 : i64, scratch_operands = 0 : i64, tpu.core_type = #tpu.core_type<tc>} {
    %c0 = arith.constant 0 : index
    %0 = memref.load %arg0[%c0] : memref<4xf32, #tpu.memory_space<smem>>
    %c0_0 = arith.constant 0 : index
    %c0_1 = arith.constant 0 : index
    %1 = vector.load %arg1[%c0_0, %c0_1] : memref<8x128xf32, #tpu.memory_space<vmem>>, vector<1x128xf32>
    %2 = vector.broadcast %0 : f32 to vector<1x128xf32>
    %3 = arith.mulf %2, %1 : vector<1x128xf32>
    %c1 = arith.constant 1 : index
    %4 = memref.load %arg0[%c1] : memref<4xf32, #tpu.memory_space<smem>>
    %c1_2 = arith.constant 1 : index
    %c0_3 = arith.constant 0 : index
    %5 = vector.load %arg1[%c1_2, %c0_3] : memref<8x128xf32, #tpu.memory_space<vmem>>, vector<1x128xf32>
    %6 = vector.broadcast %4 : f32 to vector<1x128xf32>
    %7 = arith.mulf %6, %5 : vector<1x128xf32>
    %8 = arith.addf %3, %7 : vector<1x128xf32>
    %c2 = arith.constant 2 : index
    %9 = memref.load %arg0[%c2] : memref<4xf32, #tpu.memory_space<smem>>
    %c2_4 = arith.constant 2 : index
    %c0_5 = arith.constant 0 : index
    %10 = vector.load %arg1[%c2_4, %c0_5] : memref<8x128xf32, #tpu.memory_space<vmem>>, vector<1x128xf32>
    %11 = vector.broadcast %9 : f32 to vector<1x128xf32>
    %12 = arith.mulf %11, %10 : vector<1x128xf32>
    %13 = arith.addf %8, %12 : vector<1x128xf32>
    %c3 = arith.constant 3 : index
    %14 = memref.load %arg0[%c3] : memref<4xf32, #tpu.memory_space<smem>>
    %c3_6 = arith.constant 3 : index
    %c0_7 = arith.constant 0 : index
    %15 = vector.load %arg1[%c3_6, %c0_7] : memref<8x128xf32, #tpu.memory_space<vmem>>, vector<1x128xf32>
    %16 = vector.broadcast %14 : f32 to vector<1x128xf32>
    %17 = arith.mulf %16, %15 : vector<1x128xf32>
    %18 = arith.addf %13, %17 : vector<1x128xf32>
    %c4 = arith.constant 4 : index
    %c0_8 = arith.constant 0 : index
    %19 = vector.load %arg1[%c4, %c0_8] : memref<8x128xf32, #tpu.memory_space<vmem>>, vector<1x128xf32>
    %20 = arith.addf %18, %19 : vector<1x128xf32>
    %cst = arith.constant 0.000000e+00 : f32
    %21 = vector.broadcast %cst : f32 to vector<1x128xf32>
    %22 = arith.maximumf %20, %21 : vector<1x128xf32>
    %c5 = arith.constant 5 : index
    %c0_9 = arith.constant 0 : index
    %23 = vector.load %arg1[%c5, %c0_9] : memref<8x128xf32, #tpu.memory_space<vmem>>, vector<1x128xf32>
    %24 = arith.mulf %22, %23 : vector<1x128xf32>
    %c6 = arith.constant 6 : index
    %c0_10 = arith.constant 0 : index
    %25 = vector.load %arg1[%c6, %c0_10] : memref<8x128xf32, #tpu.memory_space<vmem>>, vector<1x128xf32>
    %26 = arith.addf %24, %25 : vector<1x128xf32>
    %cst_11 = arith.constant dense<0.000000e+00> : vector<1xf32>
    %27 = vector.multi_reduction <add>, %26, %cst_11 [1] : vector<1x128xf32> to vector<1xf32>
    %28 = vector.shape_cast %27 : vector<1xf32> to vector<1x1xf32>
    %cst_12 = arith.constant 0.000000e+00 : f32
    %29 = vector.broadcast %cst_12 : f32 to vector<1x1xf32>
    %30 = arith.subf %29, %28 : vector<1x1xf32>
    %31 = math.exp %30 : vector<1x1xf32>
    %cst_13 = arith.constant 1.000000e+00 : f32
    %32 = vector.broadcast %cst_13 : f32 to vector<1x1xf32>
    %33 = arith.addf %32, %31 : vector<1x1xf32>
    %cst_14 = arith.constant 1.000000e+00 : f32
    %34 = vector.broadcast %cst_14 : f32 to vector<1x1xf32>
    %35 = arith.divf %34, %33 : vector<1x1xf32>
    %36 = tpu.iota {dimensions = array<i32: 1>} : vector<1x2xi32>
    %c0_i32 = arith.constant 0 : i32
    %37 = vector.broadcast %c0_i32 : i32 to vector<1x2xi32>
    %38 = arith.cmpi eq, %36, %37 : vector<1x2xi32>
    %cst_15 = arith.constant 1.000000e+00 : f32
    %39 = vector.broadcast %cst_15 : f32 to vector<1x1xf32>
    %40 = arith.subf %39, %35 : vector<1x1xf32>
    %41 = vector.shape_cast %35 : vector<1x1xf32> to vector<1x1xf32>
    %42 = vector.broadcast %41 : vector<1x1xf32> to vector<1x2xf32>
    %43 = vector.shape_cast %40 : vector<1x1xf32> to vector<1x1xf32>
    %44 = vector.broadcast %43 : vector<1x1xf32> to vector<1x2xf32>
    %45 = arith.select %38, %42, %44 : vector<1x2xi1>, vector<1x2xf32>
    %c0_16 = arith.constant 0 : index
    %c0_17 = arith.constant 0 : index
    %46 = vector.load %arg2[%c0_16, %c0_17] : memref<1x2xf32, #tpu.memory_space<vmem>>, vector<1x2xf32>
    tpu.vector_store %arg2[%c0_16, %c0_17], %45 {strides = array<i32>} : memref<1x2xf32, #tpu.memory_space<vmem>>, vector<1x2xf32>,
    return
  }
}

</mosaic_0001>

<llo_original>
// kernel: reinforce_net_forward.1
$region0: #{reinforce_net_forward.1}
  #allocation0 [shape = 'u32[]', space=smem, size = 0x4, offset = 0x4, fixed_abs, tag = 'smem constant byte address 0x4 - core index']
  #allocation1 [shape = 'u32[72,128]{1,0:T(1,128)}', space=vmem, size = 0x9000, scoped, tag = 'internal scratch']
  %s0 = inlined_call_operand.hbm [shape: f32[4], index: 0, kind: input, shape index: {}]
  %s1 = inlined_call_operand.hbm [shape: f32[8,128], index: 1, kind: input, shape index: {}]
  %s2 = inlined_call_operand.hbm [shape: f32[1,2], index: 2, kind: output, shape index: {}]
  %s3 = sld [smem:[#allocation0]]
  $region26: #{reinforce_net_forward.1} parent=0
    _
  %s5 = ssub.s32 1, %s3
  %s6 = scalar_select 0, %s5, %s3
  $region1: #{reinforce_net_forward.1} parent=0
    #allocation2 [shape = 'u8[512]{0}', space=smem, size = 0x200, scoped, tag = 'input window, operand 0, single buffered']
    #allocation3 [shape = 's32[1]{0}', space=sflag, size = 0x4, scoped, tag = 'scoped memory for reinforce_net_forward.1']
    #allocation4 [shape = 's32[1]{0}', space=sflag, size = 0x4, scoped, tag = 'scoped memory for reinforce_net_forward.1']
    #allocation5 [shape = 's32[1]{0}', space=sflag, size = 0x4, scoped, tag = 'scoped memory for reinforce_net_forward.1']
    #allocation6 [shape = 'u8[4096]{0}', space=vmem, size = 0x1000, scoped, tag = 'input window, operand 1, single buffered']
    #allocation7 [shape = 'u8[512]{0}', space=vmem, size = 0x400, scoped, tag = 'output window, operand 0, single buffered']
    %7 = vsyncpa [#allocation5], 0
    %8 = vsyncpa [#allocation3], 0
    %9 = vsyncpa [#allocation4], 0
    // Predicated region
    $region2: #{reinforce_net_forward.1} parent=1 // pred_check
      _
    $region3: #{reinforce_net_forward.1} parent=1 // pred_check_branch
      %11 = sbr.rel (0) target = $region5
    $region4: #{reinforce_net_forward.1} parent=1 // pred_region
      %13 = vsyncadd [#allocation5], 0
      %s15 = sshll.u32 %s0, 4
      %s16 = int_to_ptr.hbm [resolvable:$true] %s15
      %18 = dma.hbm_to_smem %s16, 16, [#allocation2], [#allocation5]
    $region5: #{reinforce_net_forward.1} parent=1 // pred_fallthru
      _
    // Predicated region
    $region6: #{reinforce_net_forward.1} parent=1 // pred_check
      _
    $region7: #{reinforce_net_forward.1} parent=1 // pred_check_branch
      %20 = sbr.rel (0) target = $region9
    $region8: #{reinforce_net_forward.1} parent=1 // pred_region
      %22 = vsyncadd [#allocation3], 0
      %s24 = sshll.u32 %s1, 4
      %s25 = int_to_ptr.hbm [resolvable:$true] %s24
      %s26 = sshll.u32 [#allocation6], 4
      %s27 = int_to_ptr.vmem [resolvable:$true] %s26
      %29 = dma.hbm_to_vmem [thread:$0]  %s25, 128, %s27, [#allocation3]
    $region9: #{reinforce_net_forward.1} parent=1 // pred_fallthru
      _
    // Predicated region
    $region10: #{reinforce_net_forward.1} parent=1 // pred_check
      _
    $region11: #{reinforce_net_forward.1} parent=1 // pred_check_branch
      %31 = sbr.rel (0) target = $region13
    $region12: #{reinforce_net_forward.1} parent=1 // pred_region
      %33 = dma.done [#allocation5], 16
    $region13: #{reinforce_net_forward.1} parent=1 // pred_fallthru
      _
    // Predicated region
    $region14: #{reinforce_net_forward.1} parent=1 // pred_check
      _
    $region15: #{reinforce_net_forward.1} parent=1 // pred_check_branch
      %35 = sbr.rel (0) target = $region17
    $region16: #{reinforce_net_forward.1} parent=1 // pred_region
      %37 = dma.done [#allocation3], 128
    $region17: #{reinforce_net_forward.1} parent=1 // pred_fallthru
      _
    %38 = sfence
    %s39 = sld [smem:[#allocation2]]
    %v40 = vld [vmem:[#allocation6] sm:$0x1]
    %v41 = vstv %s39
    %v42 = vmul.f32 %v41, %v40
    %s43 = sld [smem:[#allocation2 + $0x1]]
    %v44 = vld [vmem:[#allocation6 + $0x1] sm:$0x1]
    %v45 = vstv %s43
    %v46 = vmul.f32 %v45, %v44
    %v47 = vadd.f32 %v42, %v46
    %s48 = sld [smem:[#allocation2 + $0x2]]
    %v49 = vld [vmem:[#allocation6 + $0x2] sm:$0x1]
    %v50 = vstv %s48
    %v51 = vmul.f32 %v50, %v49
    %v52 = vadd.f32 %v47, %v51
    %s53 = sld [smem:[#allocation2 + $0x3]]
    %v54 = vld [vmem:[#allocation6 + $0x3] sm:$0x1]
    %v55 = vstv %s53
    %v56 = vmul.f32 %v55, %v54
    %v57 = vadd.f32 %v52, %v56
    %v58 = vld [vmem:[#allocation6 + $0x4] sm:$0x1]
    %v59 = vadd.f32 %v57, %v58
    %v60 = vmax.f32 %v59, 0.0
    %v61 = vld [vmem:[#allocation6 + $0x5] sm:$0x1]
    %v62 = vmul.f32 %v60, %v61
    %v63 = vld [vmem:[#allocation6 + $0x6] sm:$0x1]
    %v64 = vadd.f32 %v62, %v63
    %vm65 = vcmask 1040384
    %v66 = vsel %vm65, %v64, 0.0
    %67 = vadd.xlane.f32.xlu0 %v66
    %v68 = vpop.xlane.xlu0 %67
    %v69 = vsub.f32 0.0, %v68
    %v70 = vmul.f32 %v69, 1.442695
    %v71 = vpow.pop %v70
    %v72 = vadd.f32 %v71, 1.0
    %v73 = vrcp.pop %v72
    %v74 = vmul.f32 %v72, %v73
    %v75 = vsub.f32 1.0, %v74
    %v76 = vmul.f32 %v73, %v75
    %v77 = vadd.f32 %v73, %v76
    %vm78 = vweird.f32 %v72
    %vm79 = vweird.f32 %v73
    %vm80 = vmor %vm78, %vm79
    %v81 = vsel %vm80, %v73, %v77
    %v82 = vand.u32 2147483647, %v72
    %vm83 = vcmp.eq.f32.partialorder %v82, 8.507059e+37
    %v84 = vand.u32 %v72, 2147483648
    %v85 = vor.u32 1.1754944e-38, %v84
    %v86 = vsel %vm83, %v85, %v81
    %v87 = vmul.f32 1.0, %v86
    %v88 = vlaneseq
    %v89 = vand.u32 %v88, 127
    %vm90 = vcmp.eq.s32.totalorder %v89, 0
    %v91 = vsub.f32 1.0, %v87
    %v92 = vsel %vm90, %v87, %v91
    %vm93 = vcmask 8192
    %94 = vst.msk [vmem:[#allocation7] sm:$0x1] %vm93, %v92
    // Predicated region
    $region18: #{reinforce_net_forward.1} parent=1 // pred_check
      _
    $region19: #{reinforce_net_forward.1} parent=1 // pred_check_branch
      %96 = sbr.rel (0) target = $region21
    $region20: #{reinforce_net_forward.1} parent=1 // pred_region
      %98 = vsyncadd [#allocation4], 0
      %s100 = sshll.u32 [#allocation7], 4
      %s101 = int_to_ptr.vmem [resolvable:$true] %s100
      %s102 = sshll.u32 %s2, 4
      %s103 = int_to_ptr.hbm [resolvable:$true] %s102
      %105 = dma.vmem_to_hbm [thread:$0]  %s101, 16, %s103, [#allocation4]
    $region21: #{reinforce_net_forward.1} parent=1 // pred_fallthru
      _
    // Predicated region
    $region22: #{reinforce_net_forward.1} parent=1 // pred_check
      _
    $region23: #{reinforce_net_forward.1} parent=1 // pred_check_branch
      %107 = sbr.rel (0) target = $region25
    $region24: #{reinforce_net_forward.1} parent=1 // pred_region
      %109 = dma.done [#allocation4], 16
    $region25: #{reinforce_net_forward.1} parent=1 // pred_fallthru
      _
    %110 = vsyncpa [#allocation3], 1
    %111 = vsyncpa [#allocation4], 1
    %112 = vsyncpa [#allocation5], 1

</llo_original>
